<compile_context>
chip_gen: v5e
topology: v5e:2x2
jax: 0.10.0
libtpu: 0.0.40
codegen_flags: <defaults>
</compile_context>

<pallas_src>
import functools

import jax
import jax.numpy as jnp
import numpy as np
from jax import lax
from jax.experimental import pallas as pl
from jax.experimental.pallas import tpu as pltpu


_TAPS = tuple((dy, dx) for dy in (-1, 0, 1) for dx in (-1, 0, 1))


def aff_kernel(x1_ref, x2_ref, x4_ref, w1a_ref, w1b_ref, w1c_ref, b1_ref,
               w2s_ref, b2_ref, mask_ref, o_ref, *, img_w):
    # Block shapes (B images per grid step, lane axis = flattened H*W):
    #   x*_ref  : (B, C_each, HW)     w1*_ref : (Cm, C_each)   b1_ref : (Cm, 1)
    #   w2s_ref : (Co, 9*Cm)          b2_ref  : (Co, 1)        mask_ref: (9, HW)
    #   o_ref   : (B, Co, HW)
    n_img = o_ref.shape[0]
    hw = o_ref.shape[2]

    # Hoist all constant-block loads out of the per-image loop.
    w1a = w1a_ref[...]
    w1b = w1b_ref[...]
    w1c = w1c_ref[...]
    b1 = b1_ref[...]
    w2s = w2s_ref[...]
    b2 = b2_ref[...]
    masks = [mask_ref[k:k + 1, :] for k in range(9)]          # each (1, HW)

    for b in range(n_img):
        # --- BasicConv #1: 1x1 conv.  w1 is split over the three concat
        # chunks so the channel concat never materializes anywhere; bias and
        # ReLU fused into the epilogue.
        h = (jnp.dot(w1a, x1_ref[b], preferred_element_type=jnp.float32) +
             jnp.dot(w1b, x2_ref[b], preferred_element_type=jnp.float32) +
             jnp.dot(w1c, x4_ref[b], preferred_element_type=jnp.float32))
        h = jnp.maximum(h + b1, 0.0)                          # (Cm, HW)

        # --- BasicConv #2: 3x3 conv, padding=1, no ReLU.  All 9 taps fused
        # into a single K = 9*Cm matmul: lane-rolled copies of h (XLU slot,
        # co-issues under MXU/VPU), zeroed at invalid border positions, are
        # stacked along sublanes.
        taps = []
        for k, (dy, dx) in enumerate(_TAPS):
            if dy == 0 and dx == 0:
                taps.append(h)                                # centre tap
                continue
            off = dy * img_w + dx
            # sh[:, p] = h[:, p + off] (circular lane rotation), wrapped
            # border positions zeroed by the validity mask.
            sh = pltpu.roll(h, shift=(-off) % hw, axis=1)
            taps.append(sh * masks[k])
        hs = jnp.concatenate(taps, axis=0)                    # (9*Cm, HW)

        y = jnp.dot(w2s, hs, preferred_element_type=jnp.float32) + b2
        o_ref[b] = y.astype(o_ref.dtype)


def _border_masks(H, W):
    """mask[k, p] = 1.0 iff the (dy,dx) neighbour of pixel p lies inside the
    image, for k = (dy+1)*3 + (dx+1).  Precomputed once on the host.
    TODO(synk): for very large H*W, generate these in-kernel from
    lax.broadcasted_iota (row/col compares) and add a row-band grid axis over
    HW with a +/-W lane halo so per-step blocks fit v7x's 32 MiB scoped VMEM."""
    r = np.arange(H * W) // W
    c = np.arange(H * W) % W
    masks = []
    for dy, dx in _TAPS:
        ok = (r + dy >= 0) & (r + dy < H) & (c + dx >= 0) & (c + dx < W)
        masks.append(ok.astype(np.float32))
    return jnp.asarray(np.stack(masks, axis=0))               # (9, HW)


def _pick_images_per_step(n):
    """Largest divisor of n in {8,4,2} that still leaves >= 2 grid steps
    (keeps both v7x TensorCores busy); falls back to 1."""
    for b in (8, 4, 2):
        if n % b == 0 and n // b >= 2:
            return b
    return 1


def aff_forward(x1, x2, x4, w1, b1, w2, b2):
    """x1/x2/x4: NCHW f32 (channel-concatenated *inside* the kernel).
    w1: (Cin, Cm)  b1: (1, Cm)  w2: (3, 3, Cm, Co) HWIO  b2: (1, Co).
    Returns NCHW f32, matching the PyTorch AFF module."""
    N, c1, H, W = x1.shape
    c2, c4 = x2.shape[1], x4.shape[1]
    HW = H * W
    cin = c1 + c2 + c4
    cm = w1.shape[1]
    co = w2.shape[-1]
    assert w1.shape[0] == cin

    B = _pick_images_per_step(N)

    # Free (metadata-only) flatten of H,W -> HW; no concat, no transposes of
    # the activation tensors anywhere in the wrapper.
    x1f = x1.reshape(N, c1, HW)
    x2f = x2.reshape(N, c2, HW)
    x4f = x4.reshape(N, c4, HW)

    # Tiny one-time weight re-layouts done by XLA outside the kernel.
    w1t = jnp.transpose(w1)                                   # (Cm, Cin)
    w1a, w1b, w1c = w1t[:, :c1], w1t[:, c1:c1 + c2], w1t[:, c1 + c2:]
    b1k = jnp.transpose(b1)                                   # (Cm, 1)
    w2s = jnp.transpose(w2, (3, 0, 1, 2)).reshape(co, 9 * cm)  # (Co, 9*Cm)
    b2k = jnp.transpose(b2)                                   # (Co, 1)
    masks = _border_masks(H, W)                               # (9, HW)

    flops = N * HW * 2 * cm * (cin + 9 * co)
    bytes_accessed = 4 * (N * cin * HW + N * co * HW + 9 * HW
                          + cm * cin + cm + 9 * co * cm + co)

    out = pl.pallas_call(
        functools.partial(aff_kernel, img_w=W),
        out_shape=jax.ShapeDtypeStruct((N, co, HW), x1.dtype),
        grid=(N // B,),
        in_specs=[
            pl.BlockSpec((B, c1, HW), lambda n: (n, 0, 0)),
            pl.BlockSpec((B, c2, HW), lambda n: (n, 0, 0)),
            pl.BlockSpec((B, c4, HW), lambda n: (n, 0, 0)),
            pl.BlockSpec((cm, c1), lambda n: (0, 0)),
            pl.BlockSpec((cm, c2), lambda n: (0, 0)),
            pl.BlockSpec((cm, c4), lambda n: (0, 0)),
            pl.BlockSpec((cm, 1), lambda n: (0, 0)),
            pl.BlockSpec((co, 9 * cm), lambda n: (0, 0)),
            pl.BlockSpec((co, 1), lambda n: (0, 0)),
            pl.BlockSpec((9, HW), lambda n: (0, 0)),
        ],
        out_specs=pl.BlockSpec((B, co, HW), lambda n: (n, 0, 0)),
        compiler_params=pltpu.CompilerParams(
            dimension_semantics=("parallel",)),
        cost_estimate=pl.CostEstimate(
            flops=flops, transcendentals=0, bytes_accessed=bytes_accessed),
    )(x1f, x2f, x4f, w1a, w1b, w1c, b1k, w2s, b2k, masks)

    return out.reshape(N, co, H, W)                           # already NCHW


def aff_reference(x1, x2, x4, w1, b1, w2, b2):
    """Pure-JAX reference (NHWC convs) for correctness check."""
    x = jnp.concatenate(
        [jnp.transpose(x1, (0, 2, 3, 1)),
         jnp.transpose(x2, (0, 2, 3, 1)),
         jnp.transpose(x4, (0, 2, 3, 1))], axis=-1)
    h = jnp.einsum('nhwc,cd->nhwd', x, w1) + b1[0]
    h = jnp.maximum(h, 0.0)
    y = lax.conv_general_dilated(
        h, w2, window_strides=(1, 1), padding='SAME',
        dimension_numbers=('NHWC', 'HWIO', 'NHWC')) + b2[0]
    return jnp.transpose(y, (0, 3, 1, 2))


if __name__ == "__main__":
    # Small shapes: 3 inputs of 4 channels each -> in_channel=12, out_channel=8
    N, C_each, H, W = 4, 4, 16, 16
    cin = 3 * C_each
    cout = 8

    key = jax.random.PRNGKey(0)
    kx1, kx2, kx4, kw1, kb1, kw2, kb2 = jax.random.split(key, 7)

    x1 = jax.random.normal(kx1, (N, C_each, H, W), jnp.float32)
    x2 = jax.random.normal(kx2, (N, C_each, H, W), jnp.float32)
    x4 = jax.random.normal(kx4, (N, C_each, H, W), jnp.float32)

    # Deterministic synthetic parameters (BasicConv #1: 1x1+bias, #2: 3x3+bias)
    w1 = jax.random.normal(kw1, (cin, cout), jnp.float32) * 0.1   # (Cin, Cm)
    b1 = jax.random.normal(kb1, (1, cout), jnp.float32) * 0.1
    w2 = jax.random.normal(kw2, (3, 3, cout, cout), jnp.float32) * 0.1  # HWIO
    b2 = jax.random.normal(kb2, (1, cout), jnp.float32) * 0.1

    y = aff_forward(x1, x2, x4, w1, b1, w2, b2)
    y = jax.block_until_ready(y)

    y_ref = aff_reference(x1, x2, x4, w1, b1, w2, b2)
    assert y.shape == (N, cout, H, W)
    assert jnp.allclose(y, y_ref, atol=1e-4, rtol=1e-4), "mismatch vs reference"

    print("KERNEL_OK")
</pallas_src>

<mosaic_0001>
module attributes {stable_mosaic.version = 11 : i64} {
  func.func @aff_kernel(%arg0: i32, %arg1: memref<2x4x256xf32, #tpu.memory_space<vmem>>, %arg2: memref<2x4x256xf32, #tpu.memory_space<vmem>>, %arg3: memref<2x4x256xf32, #tpu.memory_space<vmem>>, %arg4: memref<8x4xf32, #tpu.memory_space<vmem>>, %arg5: memref<8x4xf32, #tpu.memory_space<vmem>>, %arg6: memref<8x4xf32, #tpu.memory_space<vmem>>, %arg7: memref<8x1xf32, #tpu.memory_space<vmem>>, %arg8: memref<8x72xf32, #tpu.memory_space<vmem>>, %arg9: memref<8x1xf32, #tpu.memory_space<vmem>>, %arg10: memref<9x256xf32, #tpu.memory_space<vmem>>, %arg11: memref<2x8x256xf32, #tpu.memory_space<vmem>>) attributes {dimension_semantics = [#tpu.dimension_semantics<parallel>], iteration_bounds = array<i64: 2>, scalar_prefetch = 0 : i64, scratch_operands = 0 : i64, tpu.core_type = #tpu.core_type<tc>, window_params = [{transform_indices = @transform_0, window_bounds = array<i64: 2, 4, 256>}, {transform_indices = @transform_1, window_bounds = array<i64: 2, 4, 256>}, {transform_indices = @transform_2, window_bounds = array<i64: 2, 4, 256>}, {pipeline_mode = #tpu.pipeline_mode<synchronous>, transform_indices = @transform_3, window_bounds = array<i64: 8, 4>}, {pipeline_mode = #tpu.pipeline_mode<synchronous>, transform_indices = @transform_4, window_bounds = array<i64: 8, 4>}, {pipeline_mode = #tpu.pipeline_mode<synchronous>, transform_indices = @transform_5, window_bounds = array<i64: 8, 4>}, {pipeline_mode = #tpu.pipeline_mode<synchronous>, transform_indices = @transform_6, window_bounds = array<i64: 8, 1>}, {pipeline_mode = #tpu.pipeline_mode<synchronous>, transform_indices = @transform_7, window_bounds = array<i64: 8, 72>}, {pipeline_mode = #tpu.pipeline_mode<synchronous>, transform_indices = @transform_8, window_bounds = array<i64: 8, 1>}, {pipeline_mode = #tpu.pipeline_mode<synchronous>, transform_indices = @transform_9, window_bounds = array<i64: 9, 256>}, {transform_indices = @transform_10, window_bounds = array<i64: 2, 8, 256>}]} {
    %c0 = arith.constant 0 : index
    %c0_0 = arith.constant 0 : index
    %0 = vector.load %arg4[%c0, %c0_0] : memref<8x4xf32, #tpu.memory_space<vmem>>, vector<8x4xf32>
    %c0_1 = arith.constant 0 : index
    %c0_2 = arith.constant 0 : index
    %1 = vector.load %arg5[%c0_1, %c0_2] : memref<8x4xf32, #tpu.memory_space<vmem>>, vector<8x4xf32>
    %c0_3 = arith.constant 0 : index
    %c0_4 = arith.constant 0 : index
    %2 = vector.load %arg6[%c0_3, %c0_4] : memref<8x4xf32, #tpu.memory_space<vmem>>, vector<8x4xf32>
    %c0_5 = arith.constant 0 : index
    %c0_6 = arith.constant 0 : index
    %3 = vector.load %arg7[%c0_5, %c0_6] : memref<8x1xf32, #tpu.memory_space<vmem>>, vector<8x1xf32>
    %c0_7 = arith.constant 0 : index
    %c0_8 = arith.constant 0 : index
    %4 = vector.load %arg8[%c0_7, %c0_8] : memref<8x72xf32, #tpu.memory_space<vmem>>, vector<8x72xf32>
    %c0_9 = arith.constant 0 : index
    %c0_10 = arith.constant 0 : index
    %5 = vector.load %arg9[%c0_9, %c0_10] : memref<8x1xf32, #tpu.memory_space<vmem>>, vector<8x1xf32>
    %c0_11 = arith.constant 0 : index
    %c0_12 = arith.constant 0 : index
    %6 = vector.load %arg10[%c0_11, %c0_12] : memref<9x256xf32, #tpu.memory_space<vmem>>, vector<1x256xf32>
    %c1 = arith.constant 1 : index
    %c0_13 = arith.constant 0 : index
    %7 = vector.load %arg10[%c1, %c0_13] : memref<9x256xf32, #tpu.memory_space<vmem>>, vector<1x256xf32>
    %c2 = arith.constant 2 : index
    %c0_14 = arith.constant 0 : index
    %8 = vector.load %arg10[%c2, %c0_14] : memref<9x256xf32, #tpu.memory_space<vmem>>, vector<1x256xf32>
    %c3 = arith.constant 3 : index
    %c0_15 = arith.constant 0 : index
    %9 = vector.load %arg10[%c3, %c0_15] : memref<9x256xf32, #tpu.memory_space<vmem>>, vector<1x256xf32>
    %c5 = arith.constant 5 : index
    %c0_16 = arith.constant 0 : index
    %10 = vector.load %arg10[%c5, %c0_16] : memref<9x256xf32, #tpu.memory_space<vmem>>, vector<1x256xf32>
    %c6 = arith.constant 6 : index
    %c0_17 = arith.constant 0 : index
    %11 = vector.load %arg10[%c6, %c0_17] : memref<9x256xf32, #tpu.memory_space<vmem>>, vector<1x256xf32>
    %c7 = arith.constant 7 : index
    %c0_18 = arith.constant 0 : index
    %12 = vector.load %arg10[%c7, %c0_18] : memref<9x256xf32, #tpu.memory_space<vmem>>, vector<1x256xf32>
    %c8 = arith.constant 8 : index
    %c0_19 = arith.constant 0 : index
    %13 = vector.load %arg10[%c8, %c0_19] : memref<9x256xf32, #tpu.memory_space<vmem>>, vector<1x256xf32>
    %c0_20 = arith.constant 0 : index
    %c0_21 = arith.constant 0 : index
    %c0_22 = arith.constant 0 : index
    %14 = vector.load %arg1[%c0_20, %c0_21, %c0_22] : memref<2x4x256xf32, #tpu.memory_space<vmem>>, vector<1x4x256xf32>
    %15 = vector.shape_cast %14 : vector<1x4x256xf32> to vector<4x256xf32>
    %cst = arith.constant dense<0.000000e+00> : vector<8x256xf32>
    %16 = tpu.matmul %0, %15, %cst {dimension_numbers = #tpu.dot_dimension_numbers<[1], [0], [0], [1], [0, 0, 1, 1], [], []>} : vector<8x4xf32>, vector<4x256xf32>, vector<8x256xf32> -> vector<8x256xf32>
    %c0_23 = arith.constant 0 : index
    %c0_24 = arith.constant 0 : index
    %c0_25 = arith.constant 0 : index
    %17 = vector.load %arg2[%c0_23, %c0_24, %c0_25] : memref<2x4x256xf32, #tpu.memory_space<vmem>>, vector<1x4x256xf32>
    %18 = vector.shape_cast %17 : vector<1x4x256xf32> to vector<4x256xf32>
    %cst_26 = arith.constant dense<0.000000e+00> : vector<8x256xf32>
    %19 = tpu.matmul %1, %18, %cst_26 {dimension_numbers = #tpu.dot_dimension_numbers<[1], [0], [0], [1], [0, 0, 1, 1], [], []>} : vector<8x4xf32>, vector<4x256xf32>, vector<8x256xf32> -> vector<8x256xf32>
    %20 = arith.addf %16, %19 : vector<8x256xf32>
    %c0_27 = arith.constant 0 : index
    %c0_28 = arith.constant 0 : index
    %c0_29 = arith.constant 0 : index
    %21 = vector.load %arg3[%c0_27, %c0_28, %c0_29] : memref<2x4x256xf32, #tpu.memory_space<vmem>>, vector<1x4x256xf32>
    %22 = vector.shape_cast %21 : vector<1x4x256xf32> to vector<4x256xf32>
    %cst_30 = arith.constant dense<0.000000e+00> : vector<8x256xf32>
    %23 = tpu.matmul %2, %22, %cst_30 {dimension_numbers = #tpu.dot_dimension_numbers<[1], [0], [0], [1], [0, 0, 1, 1], [], []>} : vector<8x4xf32>, vector<4x256xf32>, vector<8x256xf32> -> vector<8x256xf32>
    %24 = arith.addf %20, %23 : vector<8x256xf32>
    %25 = vector.broadcast %3 : vector<8x1xf32> to vector<8x256xf32>
    %26 = arith.addf %24, %25 : vector<8x256xf32>
    %cst_31 = arith.constant 0.000000e+00 : f32
    %27 = vector.broadcast %cst_31 : f32 to vector<8x256xf32>
    %28 = arith.maximumf %26, %27 : vector<8x256xf32>
    %c17_i32 = arith.constant 17 : i32
    %29 = tpu.dynamic_rotate %28 by %c17_i32 dim 1 : vector<8x256xf32>, i32 -> vector<8x256xf32>
    %30 = vector.broadcast %6 : vector<1x256xf32> to vector<8x256xf32>
    %31 = arith.mulf %29, %30 : vector<8x256xf32>
    %c16_i32 = arith.constant 16 : i32
    %32 = tpu.dynamic_rotate %28 by %c16_i32 dim 1 : vector<8x256xf32>, i32 -> vector<8x256xf32>
    %33 = vector.broadcast %7 : vector<1x256xf32> to vector<8x256xf32>
    %34 = arith.mulf %32, %33 : vector<8x256xf32>
    %c15_i32 = arith.constant 15 : i32
    %35 = tpu.dynamic_rotate %28 by %c15_i32 dim 1 : vector<8x256xf32>, i32 -> vector<8x256xf32>
    %36 = vector.broadcast %8 : vector<1x256xf32> to vector<8x256xf32>
    %37 = arith.mulf %35, %36 : vector<8x256xf32>
    %c1_i32 = arith.constant 1 : i32
    %38 = tpu.dynamic_rotate %28 by %c1_i32 dim 1 : vector<8x256xf32>, i32 -> vector<8x256xf32>
    %39 = vector.broadcast %9 : vector<1x256xf32> to vector<8x256xf32>
    %40 = arith.mulf %38, %39 : vector<8x256xf32>
    %c255_i32 = arith.constant 255 : i32
    %41 = tpu.dynamic_rotate %28 by %c255_i32 dim 1 : vector<8x256xf32>, i32 -> vector<8x256xf32>
    %42 = vector.broadcast %10 : vector<1x256xf32> to vector<8x256xf32>
    %43 = arith.mulf %41, %42 : vector<8x256xf32>
    %c241_i32 = arith.constant 241 : i32
    %44 = tpu.dynamic_rotate %28 by %c241_i32 dim 1 : vector<8x256xf32>, i32 -> vector<8x256xf32>
    %45 = vector.broadcast %11 : vector<1x256xf32> to vector<8x256xf32>
    %46 = arith.mulf %44, %45 : vector<8x256xf32>
    %c240_i32 = arith.constant 240 : i32
    %47 = tpu.dynamic_rotate %28 by %c240_i32 dim 1 : vector<8x256xf32>, i32 -> vector<8x256xf32>
    %48 = vector.broadcast %12 : vector<1x256xf32> to vector<8x256xf32>
    %49 = arith.mulf %47, %48 : vector<8x256xf32>
    %c239_i32 = arith.constant 239 : i32
    %50 = tpu.dynamic_rotate %28 by %c239_i32 dim 1 : vector<8x256xf32>, i32 -> vector<8x256xf32>
    %51 = vector.broadcast %13 : vector<1x256xf32> to vector<8x256xf32>
    %52 = arith.mulf %50, %51 : vector<8x256xf32>
    %53 = tpu.concatenate %31, %34, %37, %40, %28, %43, %46, %49, %52 in 0 : vector<8x256xf32>, vector<8x256xf32>, vector<8x256xf32>, vector<8x256xf32>, vector<8x256xf32>, vector<8x256xf32>, vector<8x256xf32>, vector<8x256xf32>, vector<8x256xf32> -> vector<72x256xf32>
    %cst_32 = arith.constant dense<0.000000e+00> : vector<8x256xf32>
    %54 = tpu.matmul %4, %53, %cst_32 {dimension_numbers = #tpu.dot_dimension_numbers<[1], [0], [0], [1], [0, 0, 1, 1], [], []>} : vector<8x72xf32>, vector<72x256xf32>, vector<8x256xf32> -> vector<8x256xf32>
    %55 = vector.broadcast %5 : vector<8x1xf32> to vector<8x256xf32>
    %56 = arith.addf %54, %55 : vector<8x256xf32>
    %c0_33 = arith.constant 0 : index
    %c0_34 = arith.constant 0 : index
    %c0_35 = arith.constant 0 : index
    %57 = vector.load %arg11[%c0_33, %c0_34, %c0_35] : memref<2x8x256xf32, #tpu.memory_space<vmem>>, vector<1x8x256xf32>
    %58 = vector.shape_cast %57 : vector<1x8x256xf32> to vector<8x256xf32>
    %59 = vector.shape_cast %56 : vector<8x256xf32> to vector<1x8x256xf32>
    tpu.vector_store %arg11[%c0_33, %c0_34, %c0_35], %59 {strides = array<i32>} : memref<2x8x256xf32, #tpu.memory_space<vmem>>, vector<1x8x256xf32>,
    %c1_36 = arith.constant 1 : index
    %c0_37 = arith.constant 0 : index
    %c0_38 = arith.constant 0 : index
    %60 = vector.load %arg1[%c1_36, %c0_37, %c0_38] : memref<2x4x256xf32, #tpu.memory_space<vmem>>, vector<1x4x256xf32>
    %61 = vector.shape_cast %60 : vector<1x4x256xf32> to vector<4x256xf32>
    %cst_39 = arith.constant dense<0.000000e+00> : vector<8x256xf32>
    %62 = tpu.matmul %0, %61, %cst_39 {dimension_numbers = #tpu.dot_dimension_numbers<[1], [0], [0], [1], [0, 0, 1, 1], [], []>} : vector<8x4xf32>, vector<4x256xf32>, vector<8x256xf32> -> vector<8x256xf32>
    %c1_40 = arith.constant 1 : index
    %c0_41 = arith.constant 0 : index
    %c0_42 = arith.constant 0 : index
    %63 = vector.load %arg2[%c1_40, %c0_41, %c0_42] : memref<2x4x256xf32, #tpu.memory_space<vmem>>, vector<1x4x256xf32>
    %64 = vector.shape_cast %63 : vector<1x4x256xf32> to vector<4x256xf32>
    %cst_43 = arith.constant dense<0.000000e+00> : vector<8x256xf32>
    %65 = tpu.matmul %1, %64, %cst_43 {dimension_numbers = #tpu.dot_dimension_numbers<[1], [0], [0], [1], [0, 0, 1, 1], [], []>} : vector<8x4xf32>, vector<4x256xf32>, vector<8x256xf32> -> vector<8x256xf32>
    %66 = arith.addf %62, %65 : vector<8x256xf32>
    %c1_44 = arith.constant 1 : index
    %c0_45 = arith.constant 0 : index
    %c0_46 = arith.constant 0 : index
    %67 = vector.load %arg3[%c1_44, %c0_45, %c0_46] : memref<2x4x256xf32, #tpu.memory_space<vmem>>, vector<1x4x256xf32>
    %68 = vector.shape_cast %67 : vector<1x4x256xf32> to vector<4x256xf32>
    %cst_47 = arith.constant dense<0.000000e+00> : vector<8x256xf32>
    %69 = tpu.matmul %2, %68, %cst_47 {dimension_numbers = #tpu.dot_dimension_numbers<[1], [0], [0], [1], [0, 0, 1, 1], [], []>} : vector<8x4xf32>, vector<4x256xf32>, vector<8x256xf32> -> vector<8x256xf32>
    %70 = arith.addf %66, %69 : vector<8x256xf32>
    %71 = vector.broadcast %3 : vector<8x1xf32> to vector<8x256xf32>
    %72 = arith.addf %70, %71 : vector<8x256xf32>
    %cst_48 = arith.constant 0.000000e+00 : f32
    %73 = vector.broadcast %cst_48 : f32 to vector<8x256xf32>
    %74 = arith.maximumf %72, %73 : vector<8x256xf32>
    %c17_i32_49 = arith.constant 17 : i32
    %75 = tpu.dynamic_rotate %74 by %c17_i32_49 dim 1 : vector<8x256xf32>, i32 -> vector<8x256xf32>
    %76 = vector.broadcast %6 : vector<1x256xf32> to vector<8x256xf32>
    %77 = arith.mulf %75, %76 : vector<8x256xf32>
    %c16_i32_50 = arith.constant 16 : i32
    %78 = tpu.dynamic_rotate %74 by %c16_i32_50 dim 1 : vector<8x256xf32>, i32 -> vector<8x256xf32>
    %79 = vector.broadcast %7 : vector<1x256xf32> to vector<8x256xf32>
    %80 = arith.mulf %78, %79 : vector<8x256xf32>
    %c15_i32_51 = arith.constant 15 : i32
    %81 = tpu.dynamic_rotate %74 by %c15_i32_51 dim 1 : vector<8x256xf32>, i32 -> vector<8x256xf32>
    %82 = vector.broadcast %8 : vector<1x256xf32> to vector<8x256xf32>
    %83 = arith.mulf %81, %82 : vector<8x256xf32>
    %c1_i32_52 = arith.constant 1 : i32
    %84 = tpu.dynamic_rotate %74 by %c1_i32_52 dim 1 : vector<8x256xf32>, i32 -> vector<8x256xf32>
    %85 = vector.broadcast %9 : vector<1x256xf32> to vector<8x256xf32>
    %86 = arith.mulf %84, %85 : vector<8x256xf32>
    %c255_i32_53 = arith.constant 255 : i32
    %87 = tpu.dynamic_rotate %74 by %c255_i32_53 dim 1 : vector<8x256xf32>, i32 -> vector<8x256xf32>
    %88 = vector.broadcast %10 : vector<1x256xf32> to vector<8x256xf32>
    %89 = arith.mulf %87, %88 : vector<8x256xf32>
    %c241_i32_54 = arith.constant 241 : i32
    %90 = tpu.dynamic_rotate %74 by %c241_i32_54 dim 1 : vector<8x256xf32>, i32 -> vector<8x256xf32>
    %91 = vector.broadcast %11 : vector<1x256xf32> to vector<8x256xf32>
    %92 = arith.mulf %90, %91 : vector<8x256xf32>
    %c240_i32_55 = arith.constant 240 : i32
    %93 = tpu.dynamic_rotate %74 by %c240_i32_55 dim 1 : vector<8x256xf32>, i32 -> vector<8x256xf32>
    %94 = vector.broadcast %12 : vector<1x256xf32> to vector<8x256xf32>
    %95 = arith.mulf %93, %94 : vector<8x256xf32>
    %c239_i32_56 = arith.constant 239 : i32
    %96 = tpu.dynamic_rotate %74 by %c239_i32_56 dim 1 : vector<8x256xf32>, i32 -> vector<8x256xf32>
    %97 = vector.broadcast %13 : vector<1x256xf32> to vector<8x256xf32>
    %98 = arith.mulf %96, %97 : vector<8x256xf32>
    %99 = tpu.concatenate %77, %80, %83, %86, %74, %89, %92, %95, %98 in 0 : vector<8x256xf32>, vector<8x256xf32>, vector<8x256xf32>, vector<8x256xf32>, vector<8x256xf32>, vector<8x256xf32>, vector<8x256xf32>, vector<8x256xf32>, vector<8x256xf32> -> vector<72x256xf32>
    %cst_57 = arith.constant dense<0.000000e+00> : vector<8x256xf32>
    %100 = tpu.matmul %4, %99, %cst_57 {dimension_numbers = #tpu.dot_dimension_numbers<[1], [0], [0], [1], [0, 0, 1, 1], [], []>} : vector<8x72xf32>, vector<72x256xf32>, vector<8x256xf32> -> vector<8x256xf32>
    %101 = vector.broadcast %5 : vector<8x1xf32> to vector<8x256xf32>
    %102 = arith.addf %100, %101 : vector<8x256xf32>
    %c1_58 = arith.constant 1 : index
    %c0_59 = arith.constant 0 : index
    %c0_60 = arith.constant 0 : index
    %103 = vector.load %arg11[%c1_58, %c0_59, %c0_60] : memref<2x8x256xf32, #tpu.memory_space<vmem>>, vector<1x8x256xf32>
    %104 = vector.shape_cast %103 : vector<1x8x256xf32> to vector<8x256xf32>
    %105 = vector.shape_cast %102 : vector<8x256xf32> to vector<1x8x256xf32>
    tpu.vector_store %arg11[%c1_58, %c0_59, %c0_60], %105 {strides = array<i32>} : memref<2x8x256xf32, #tpu.memory_space<vmem>>, vector<1x8x256xf32>,
    return
  }
  func.func @transform_0(%arg0: i32) -> (i32, i32, i32) {
    %c0_i32 = arith.constant 0 : i32
    %c0_i32_0 = arith.constant 0 : i32
    %c0_i32_1 = arith.constant 0 : i32
    return %arg0, %c0_i32, %c0_i32_0 : i32, i32, i32
  }
  func.func @transform_1(%arg0: i32) -> (i32, i32, i32) {
    %c0_i32 = arith.constant 0 : i32
    %c0_i32_0 = arith.constant 0 : i32
    %c0_i32_1 = arith.constant 0 : i32
    return %arg0, %c0_i32, %c0_i32_0 : i32, i32, i32
  }
  func.func @transform_2(%arg0: i32) -> (i32, i32, i32) {
    %c0_i32 = arith.constant 0 : i32
    %c0_i32_0 = arith.constant 0 : i32
    %c0_i32_1 = arith.constant 0 : i32
    return %arg0, %c0_i32, %c0_i32_0 : i32, i32, i32
  }
  func.func @transform_3(%arg0: i32) -> (i32, i32) {
    %c0_i32 = arith.constant 0 : i32
    %c0_i32_0 = arith.constant 0 : i32
    %c0_i32_1 = arith.constant 0 : i32
    return %c0_i32, %c0_i32_0 : i32, i32
  }
  func.func @transform_4(%arg0: i32) -> (i32, i32) {
    %c0_i32 = arith.constant 0 : i32
    %c0_i32_0 = arith.constant 0 : i32
    %c0_i32_1 = arith.constant 0 : i32
    return %c0_i32, %c0_i32_0 : i32, i32
  }
  func.func @transform_5(%arg0: i32) -> (i32, i32) {
    %c0_i32 = arith.constant 0 : i32
    %c0_i32_0 = arith.constant 0 : i32
    %c0_i32_1 = arith.constant 0 : i32
    return %c0_i32, %c0_i32_0 : i32, i32
  }
  func.func @transform_6(%arg0: i32) -> (i32, i32) {
    %c0_i32 = arith.constant 0 : i32
    %c0_i32_0 = arith.constant 0 : i32
    %c0_i32_1 = arith.constant 0 : i32
    return %c0_i32, %c0_i32_0 : i32, i32
  }
  func.func @transform_7(%arg0: i32) -> (i32, i32) {
    %c0_i32 = arith.constant 0 : i32
    %c0_i32_0 = arith.constant 0 : i32
    %c0_i32_1 = arith.constant 0 : i32
    return %c0_i32, %c0_i32_0 : i32, i32
  }
  func.func @transform_8(%arg0: i32) -> (i32, i32) {
    %c0_i32 = arith.constant 0 : i32
    %c0_i32_0 = arith.constant 0 : i32
    %c0_i32_1 = arith.constant 0 : i32
    return %c0_i32, %c0_i32_0 : i32, i32
  }
  func.func @transform_9(%arg0: i32) -> (i32, i32) {
    %c0_i32 = arith.constant 0 : i32
    %c0_i32_0 = arith.constant 0 : i32
    %c0_i32_1 = arith.constant 0 : i32
    return %c0_i32, %c0_i32_0 : i32, i32
  }
  func.func @transform_10(%arg0: i32) -> (i32, i32, i32) {
    %c0_i32 = arith.constant 0 : i32
    %c0_i32_0 = arith.constant 0 : i32
    %c0_i32_1 = arith.constant 0 : i32
    return %arg0, %c0_i32, %c0_i32_0 : i32, i32, i32
  }
}

</mosaic_0001>

<llo_original>
// kernel: tpu_custom_call.1
$region0: #{tpu_custom_call.1}
  #allocation0 [shape = 'u32[]', space=smem, size = 0x4, offset = 0x4, fixed_abs, tag = 'smem constant byte address 0x4 - core index']
  #allocation1 [shape = 'u32[72,128]{1,0:T(1,128)}', space=vmem, size = 0x9000, scoped, tag = 'internal scratch']
  %s0 = inlined_call_operand.vmem [shape: f32[4,4,256], index: 0, kind: input, shape index: {}]
  %s1 = inlined_call_operand.hbm [shape: f32[4,4,256], index: 1, kind: input, shape index: {}]
  %s2 = inlined_call_operand.hbm [shape: f32[4,4,256], index: 2, kind: input, shape index: {}]
  %s3 = inlined_call_operand.vmem [shape: f32[8,4], index: 3, kind: input, shape index: {}]
  %s4 = inlined_call_operand.vmem [shape: f32[8,4], index: 4, kind: input, shape index: {}]
  %s5 = inlined_call_operand.vmem [shape: f32[8,4], index: 5, kind: input, shape index: {}]
  %s6 = inlined_call_operand.vmem [shape: f32[8,1], index: 6, kind: input, shape index: {}]
  %s7 = inlined_call_operand.vmem [shape: f32[8,72], index: 7, kind: input, shape index: {}]
  %s8 = inlined_call_operand.vmem [shape: f32[8,1], index: 8, kind: input, shape index: {}]
  %s9 = inlined_call_operand.hbm [shape: f32[9,256], index: 9, kind: input, shape index: {}]
  %s10 = inlined_call_operand.hbm [shape: f32[4,8,256], index: 10, kind: output, shape index: {}]
  %s11 = sld [smem:[#allocation0]]
  $region85: #{tpu_custom_call.1} parent=0
    _
  %s13 = ssub.s32 1, %s11
  %s14 = scalar_select 0, %s13, %s11
  $region1: #{tpu_custom_call.1} parent=0
    #allocation2 [shape = 'u8[16384]{0}', space=vmem, size = 0x4000, scoped, tag = 'input window, operand 1']
    #allocation3 [shape = 's32[2]{0}', space=sflag, size = 0x8, scoped, tag = 'scoped memory for tpu_custom_call.1']
    #allocation4 [shape = 's32[2]{0}', space=sflag, size = 0x8, scoped, tag = 'scoped memory for tpu_custom_call.1']
    #allocation5 [shape = 'u8[16384]{0}', space=vmem, size = 0x4000, scoped, tag = 'input window, operand 2']
    #allocation6 [shape = 's32[2]{0}', space=sflag, size = 0x8, scoped, tag = 'scoped memory for tpu_custom_call.1']
    #allocation7 [shape = 'u8[16384]{0}', space=vmem, size = 0x4000, scoped, tag = 'input window, operand 9, single buffered']
    #allocation8 [shape = 'u8[32768]{0}', space=vmem, size = 0x8000, scoped, tag = 'output window, operand 0']
    %15 = vsyncpa [#allocation3], 0
    %s16 = scalar_lea.sflag [#allocation3], 1
    %17 = vsyncpa %s16, 0
    %18 = vsyncpa [#allocation6], 0
    %s19 = scalar_lea.sflag [#allocation6], 1
    %20 = vsyncpa %s19, 0
    %21 = vsyncpa [#allocation4], 0
    %s22 = scalar_lea.sflag [#allocation4], 1
    %23 = vsyncpa %s22, 0
    loop: start=0, step=1, limit=4
    $region2: #{tpu_custom_call.1} parent=1 // loop_pre_header
      _
    $region3: #{tpu_custom_call.1} parent=1 // loop_header
      %s25 = sphi 0, %s29
      %p26 = scmp.ge.s32.totalorder %s25, 4
      %s35 = sphi 0, %s37
      %s38 = sphi 0, %s35
      %s39 = sphi 0, %s38
      %s55 = sphi 0, %s39
      %s61 = sphi 0, %s63
      %s64 = sphi 0, %s61
      %s65 = sphi 0, %s64
      %s81 = sphi 0, %s65
      %s87 = sphi 0, %s89
      %s90 = sphi 0, %s87
      %s91 = sphi 0, %s90
      %s107 = sphi 0, %s91
      %s111 = sphi 0, %s111
      %s113 = sphi 0, %s111
      %s114 = sphi 0, %s113
      %s128 = sphi 0, %s114
      %s132 = sphi 0, %s132
      %s134 = sphi 0, %s132
      %s135 = sphi 0, %s134
      %s149 = sphi 0, %s135
      %s153 = sphi 0, %s153
      %s155 = sphi 0, %s153
      %s156 = sphi 0, %s155
      %s170 = sphi 0, %s156
      %s174 = sphi 0, %s174
      %s176 = sphi 0, %s174
      %s177 = sphi 0, %s176
      %s191 = sphi 0, %s177
      %s195 = sphi 0, %s195
      %s197 = sphi 0, %s195
      %s198 = sphi 0, %s197
      %s212 = sphi 0, %s198
      %s216 = sphi 0, %s216
      %s218 = sphi 0, %s216
      %s219 = sphi 0, %s218
      %s233 = sphi 0, %s219
      %s237 = sphi 0, %s237
      %s239 = sphi 0, %s237
      %s240 = sphi 0, %s239
      %s254 = sphi 0, %s240
      %s260 = sphi 0, %s262
      %s263 = sphi 0, %s260
      %s264 = sphi 0, %s263
      %s280 = sphi 0, %s264
    $region4: #{tpu_custom_call.1} parent=1 // loop_header_branch
      %28 = sbr.rel (%p26) target = $region8
    $region5: #{tpu_custom_call.1} parent=1 // loop_body
      %s30 = ssub.s32 %s25, 1
      %s31 = ssub.s32 %s25, 2
      %s32 = sadd.s32 %s25, 1
      %s33 = ssub.s32 %s25, %s32
      %p34 = scmp.eq.s32.totalorder %s33, 0
      %s36 = sadd.s32 %s35, 1
      %s37 = scalar_select %p34, %s35, %s36
      %p40 = pneg %p34
      %p41 = scmp.eq.s32.totalorder %s25, 1
      %p42 = por %p40, %p41
      %p43 = scmp.ne.s32.totalorder %s35, %s38
      %p44 = scmp.eq.s32.totalorder %s25, 0
      %p45 = por %p43, %p44
      %p46 = scmp.ne.s32.totalorder %s35, %s38
      %p47 = scmp.eq.s32.totalorder %s30, 1
      %p48 = por %p46, %p47
      %p49 = scmp.ne.s32.totalorder %s38, %s39
      %p50 = scmp.eq.s32.totalorder %s30, 0
      %p51 = por %p49, %p50
      %p52 = scmp.ne.s32.totalorder %s38, %s39
      %p53 = scmp.eq.s32.totalorder %s31, 1
      %p54 = por %p52, %p53
      %p56 = scmp.ne.s32.totalorder %s39, %s55
      %p57 = scmp.eq.s32.totalorder %s31, 0
      %p58 = por %p56, %p57
      %s59 = ssub.s32 %s25, %s32
      %p60 = scmp.eq.s32.totalorder %s59, 0
      %s62 = sadd.s32 %s61, 1
      %s63 = scalar_select %p60, %s61, %s62
      %p66 = pneg %p60
      %p67 = scmp.eq.s32.totalorder %s25, 1
      %p68 = por %p66, %p67
      %p69 = scmp.ne.s32.totalorder %s61, %s64
      %p70 = scmp.eq.s32.totalorder %s25, 0
      %p71 = por %p69, %p70
      %p72 = scmp.ne.s32.totalorder %s61, %s64
      %p73 = scmp.eq.s32.totalorder %s30, 1
      %p74 = por %p72, %p73
      %p75 = scmp.ne.s32.totalorder %s64, %s65
      %p76 = scmp.eq.s32.totalorder %s30, 0
      %p77 = por %p75, %p76
      %p78 = scmp.ne.s32.totalorder %s64, %s65
      %p79 = scmp.eq.s32.totalorder %s31, 1
      %p80 = por %p78, %p79
      %p82 = scmp.ne.s32.totalorder %s65, %s81
      %p83 = scmp.eq.s32.totalorder %s31, 0
      %p84 = por %p82, %p83
      %s85 = ssub.s32 %s25, %s32
      %p86 = scmp.eq.s32.totalorder %s85, 0
      %s88 = sadd.s32 %s87, 1
      %s89 = scalar_select %p86, %s87, %s88
      %p92 = pneg %p86
      %p93 = scmp.eq.s32.totalorder %s25, 1
      %p94 = por %p92, %p93
      %p95 = scmp.ne.s32.totalorder %s87, %s90
      %p96 = scmp.eq.s32.totalorder %s25, 0
      %p97 = por %p95, %p96
      %p98 = scmp.ne.s32.totalorder %s87, %s90
      %p99 = scmp.eq.s32.totalorder %s30, 1
      %p100 = por %p98, %p99
      %p101 = scmp.ne.s32.totalorder %s90, %s91
      %p102 = scmp.eq.s32.totalorder %s30, 0
      %p103 = por %p101, %p102
      %p104 = scmp.ne.s32.totalorder %s90, %s91
      %p105 = scmp.eq.s32.totalorder %s31, 1
      %p106 = por %p104, %p105
      %p108 = scmp.ne.s32.totalorder %s91, %s107
      %p109 = scmp.eq.s32.totalorder %s31, 0
      %p110 = por %p108, %p109
      %s112 = sadd.s32 %s111, 1
      %p115 = scmp.eq.s32.totalorder %s25, 1
      %p116 = scmp.ne.s32.totalorder %s111, %s113
      %p117 = scmp.eq.s32.totalorder %s25, 0
      %p118 = por %p116, %p117
      %p119 = scmp.ne.s32.totalorder %s111, %s113
      %p120 = scmp.eq.s32.totalorder %s30, 1
      %p121 = por %p119, %p120
      %p122 = scmp.ne.s32.totalorder %s113, %s114
      %p123 = scmp.eq.s32.totalorder %s30, 0
      %p124 = por %p122, %p123
      %p125 = scmp.ne.s32.totalorder %s113, %s114
      %p126 = scmp.eq.s32.totalorder %s31, 1
      %p127 = por %p125, %p126
      %p129 = scmp.ne.s32.totalorder %s114, %s128
      %p130 = scmp.eq.s32.totalorder %s31, 0
      %p131 = por %p129, %p130
      %s133 = sadd.s32 %s132, 1
      %p136 = scmp.eq.s32.totalorder %s25, 1
      %p137 = scmp.ne.s32.totalorder %s132, %s134
      %p138 = scmp.eq.s32.totalorder %s25, 0
      %p139 = por %p137, %p138
      %p140 = scmp.ne.s32.totalorder %s132, %s134
      %p141 = scmp.eq.s32.totalorder %s30, 1
      %p142 = por %p140, %p141
      %p143 = scmp.ne.s32.totalorder %s134, %s135
      %p144 = scmp.eq.s32.totalorder %s30, 0
      %p145 = por %p143, %p144
      %p146 = scmp.ne.s32.totalorder %s134, %s135
      %p147 = scmp.eq.s32.totalorder %s31, 1
      %p148 = por %p146, %p147
      %p150 = scmp.ne.s32.totalorder %s135, %s149
      %p151 = scmp.eq.s32.totalorder %s31, 0
      %p152 = por %p150, %p151
      %s154 = sadd.s32 %s153, 1
      %p157 = scmp.eq.s32.totalorder %s25, 1
      %p158 = scmp.ne.s32.totalorder %s153, %s155
      %p159 = scmp.eq.s32.totalorder %s25, 0
      %p160 = por %p158, %p159
      %p161 = scmp.ne.s32.totalorder %s153, %s155
      %p162 = scmp.eq.s32.totalorder %s30, 1
      %p163 = por %p161, %p162
      %p164 = scmp.ne.s32.totalorder %s155, %s156
      %p165 = scmp.eq.s32.totalorder %s30, 0
      %p166 = por %p164, %p165
      %p167 = scmp.ne.s32.totalorder %s155, %s156
      %p168 = scmp.eq.s32.totalorder %s31, 1
      %p169 = por %p167, %p168
      %p171 = scmp.ne.s32.totalorder %s156, %s170
      %p172 = scmp.eq.s32.totalorder %s31, 0
      %p173 = por %p171, %p172
      %s175 = sadd.s32 %s174, 1
      %p178 = scmp.eq.s32.totalorder %s25, 1
      %p179 = scmp.ne.s32.totalorder %s174, %s176
      %p180 = scmp.eq.s32.totalorder %s25, 0
      %p181 = por %p179, %p180
      %p182 = scmp.ne.s32.totalorder %s174, %s176
      %p183 = scmp.eq.s32.totalorder %s30, 1
      %p184 = por %p182, %p183
      %p185 = scmp.ne.s32.totalorder %s176, %s177
      %p186 = scmp.eq.s32.totalorder %s30, 0
      %p187 = por %p185, %p186
      %p188 = scmp.ne.s32.totalorder %s176, %s177
      %p189 = scmp.eq.s32.totalorder %s31, 1
      %p190 = por %p188, %p189
      %p192 = scmp.ne.s32.totalorder %s177, %s191
      %p193 = scmp.eq.s32.totalorder %s31, 0
      %p194 = por %p192, %p193
      %s196 = sadd.s32 %s195, 1
      %p199 = scmp.eq.s32.totalorder %s25, 1
      %p200 = scmp.ne.s32.totalorder %s195, %s197
      %p201 = scmp.eq.s32.totalorder %s25, 0
      %p202 = por %p200, %p201
      %p203 = scmp.ne.s32.totalorder %s195, %s197
      %p204 = scmp.eq.s32.totalorder %s30, 1
      %p205 = por %p203, %p204
      %p206 = scmp.ne.s32.totalorder %s197, %s198
      %p207 = scmp.eq.s32.totalorder %s30, 0
      %p208 = por %p206, %p207
      %p209 = scmp.ne.s32.totalorder %s197, %s198
      %p210 = scmp.eq.s32.totalorder %s31, 1
      %p211 = por %p209, %p210
      %p213 = scmp.ne.s32.totalorder %s198, %s212
      %p214 = scmp.eq.s32.totalorder %s31, 0
      %p215 = por %p213, %p214
      %s217 = sadd.s32 %s216, 1
      %p220 = scmp.eq.s32.totalorder %s25, 1
      %p221 = scmp.ne.s32.totalorder %s216, %s218
      %p222 = scmp.eq.s32.totalorder %s25, 0
      %p223 = por %p221, %p222
      %p224 = scmp.ne.s32.totalorder %s216, %s218
      %p225 = scmp.eq.s32.totalorder %s30, 1
      %p226 = por %p224, %p225
      %p227 = scmp.ne.s32.totalorder %s218, %s219
      %p228 = scmp.eq.s32.totalorder %s30, 0
      %p229 = por %p227, %p228
      %p230 = scmp.ne.s32.totalorder %s218, %s219
      %p231 = scmp.eq.s32.totalorder %s31, 1
      %p232 = por %p230, %p231
      %p234 = scmp.ne.s32.totalorder %s219, %s233
      %p235 = scmp.eq.s32.totalorder %s31, 0
      %p236 = por %p234, %p235
      %s238 = sadd.s32 %s237, 1
      %p241 = scmp.eq.s32.totalorder %s25, 1
      %p242 = scmp.ne.s32.totalorder %s237, %s239
      %p243 = scmp.eq.s32.totalorder %s25, 0
      %p244 = por %p242, %p243
      %p245 = scmp.ne.s32.totalorder %s237, %s239
      %p246 = scmp.eq.s32.totalorder %s30, 1
      %p247 = por %p245, %p246
      %p248 = scmp.ne.s32.totalorder %s239, %s240
      %p249 = scmp.eq.s32.totalorder %s30, 0
      %p250 = por %p248, %p249
      %p251 = scmp.ne.s32.totalorder %s239, %s240
      %p252 = scmp.eq.s32.totalorder %s31, 1
      %p253 = por %p251, %p252
      %p255 = scmp.ne.s32.totalorder %s240, %s254
      %p256 = scmp.eq.s32.totalorder %s31, 0
      %p257 = por %p255, %p256
      %s258 = ssub.s32 %s25, %s32
      %p259 = scmp.eq.s32.totalorder %s258, 0
      %s261 = sadd.s32 %s260, 1
      %s262 = scalar_select %p259, %s260, %s261
      %p265 = pneg %p259
      %p266 = scmp.eq.s32.totalorder %s25, 1
      %p267 = por %p265, %p266
      %p268 = scmp.ne.s32.totalorder %s260, %s263
      %p269 = scmp.eq.s32.totalorder %s25, 0
      %p270 = por %p268, %p269
      %p271 = scmp.ne.s32.totalorder %s260, %s263
      %p272 = scmp.eq.s32.totalorder %s30, 1
      %p273 = por %p271, %p272
      %p274 = scmp.ne.s32.totalorder %s263, %s264
      %p275 = scmp.eq.s32.totalorder %s30, 0
      %p276 = por %p274, %p275
      %p277 = scmp.ne.s32.totalorder %s263, %s264
      %p278 = scmp.eq.s32.totalorder %s31, 1
      %p279 = por %p277, %p278
      %p281 = scmp.ne.s32.totalorder %s264, %s280
      %p282 = scmp.eq.s32.totalorder %s31, 0
      %p283 = por %p281, %p282
      %p284 = scmp.le.s32.totalorder 1, %s25
      %p285 = scmp.lt.s32.totalorder %s25, 3
      %p286 = pnand %p284, %p285
      %p287 = pneg %p286
      // Predicated region
      $region9: #{tpu_custom_call.1} parent=5 // pred_check
        _
      $region10: #{tpu_custom_call.1} parent=5 // pred_check_branch
        %289 = sbr.rel (%p286) target = $region12
      $region11: #{tpu_custom_call.1} parent=5 // pred_region
        %s290 = ssub.s32 %s25, 1
        // Predicated region
        $region13: #{tpu_custom_call.1} parent=11 // pred_check
          %p291 = pneg %p124
        $region14: #{tpu_custom_call.1} parent=11 // pred_check_branch
          %293 = sbr.rel (%p291) target = $region16
        $region15: #{tpu_custom_call.1} parent=11 // pred_region
          _
        $region16: #{tpu_custom_call.1} parent=11 // pred_fallthru
          _
        // Predicated region
        $region17: #{tpu_custom_call.1} parent=11 // pred_check
          %p294 = pneg %p145
        $region18: #{tpu_custom_call.1} parent=11 // pred_check_branch
          %296 = sbr.rel (%p294) target = $region20
        $region19: #{tpu_custom_call.1} parent=11 // pred_region
          _
        $region20: #{tpu_custom_call.1} parent=11 // pred_fallthru
          _
        // Predicated region
        $region21: #{tpu_custom_call.1} parent=11 // pred_check
          %p297 = pneg %p166
        $region22: #{tpu_custom_call.1} parent=11 // pred_check_branch
          %299 = sbr.rel (%p297) target = $region24
        $region23: #{tpu_custom_call.1} parent=11 // pred_region
          _
        $region24: #{tpu_custom_call.1} parent=11 // pred_fallthru
          _
        // Predicated region
        $region25: #{tpu_custom_call.1} parent=11 // pred_check
          %p300 = pneg %p187
        $region26: #{tpu_custom_call.1} parent=11 // pred_check_branch
          %302 = sbr.rel (%p300) target = $region28
        $region27: #{tpu_custom_call.1} parent=11 // pred_region
          _
        $region28: #{tpu_custom_call.1} parent=11 // pred_fallthru
          _
        // Predicated region
        $region29: #{tpu_custom_call.1} parent=11 // pred_check
          %p303 = pneg %p208
        $region30: #{tpu_custom_call.1} parent=11 // pred_check_branch
          %305 = sbr.rel (%p303) target = $region32
        $region31: #{tpu_custom_call.1} parent=11 // pred_region
          _
        $region32: #{tpu_custom_call.1} parent=11 // pred_fallthru
          _
        // Predicated region
        $region33: #{tpu_custom_call.1} parent=11 // pred_check
          %p306 = pneg %p229
        $region34: #{tpu_custom_call.1} parent=11 // pred_check_branch
          %308 = sbr.rel (%p306) target = $region36
        $region35: #{tpu_custom_call.1} parent=11 // pred_region
          _
        $region36: #{tpu_custom_call.1} parent=11 // pred_fallthru
          _
        // Predicated region
        $region37: #{tpu_custom_call.1} parent=11 // pred_check
          %p309 = pneg %p250
        $region38: #{tpu_custom_call.1} parent=11 // pred_check_branch
          %311 = sbr.rel (%p309) target = $region40
        $region39: #{tpu_custom_call.1} parent=11 // pred_region
          %313 = vsyncadd [#allocation6], 0
          %s314 = sshll.u32 %s9, 4
          %s315 = int_to_ptr.hbm [resolvable:$true] %s314
          %s316 = sshll.u32 [#allocation7], 4
          %s317 = int_to_ptr.vmem [resolvable:$true] %s316
          %322 = dma.hbm_to_vmem [thread:$0]  %s315, 512, %s317, [#allocation6], 256, 256, 16
        $region40: #{tpu_custom_call.1} parent=11 // pred_fallthru
          _
      $region12: #{tpu_custom_call.1} parent=5 // pred_fallthru
        _
      %p323 = scmp.lt.s32.totalorder %s25, 2
      // Predicated region
      $region41: #{tpu_custom_call.1} parent=5 // pred_check
        %p324 = pneg %p323
      $region42: #{tpu_custom_call.1} parent=5 // pred_check_branch
        %326 = sbr.rel (%p324) target = $region44
      $region43: #{tpu_custom_call.1} parent=5 // pred_region
        // Predicated region
        $region45: #{tpu_custom_call.1} parent=43 // pred_check
          %p327 = pneg %p45
        $region46: #{tpu_custom_call.1} parent=43 // pred_check_branch
          %329 = sbr.rel (%p327) target = $region48
        $region47: #{tpu_custom_call.1} parent=43 // pred_region
          %s330 = smul.u32 2, %s25
          %p331 = scmp.lt.s32.totalorder %s330, 3
          %s332 = scalar_select %p331, %s330, 3
          %s333 = smul.addr %s332, 2
          %s334 = smul.addr %s333, 4
          %s335 = scalar_lea.vmem %s0, %s334
          %s336 = smul.u32 2, %s25
        $region48: #{tpu_custom_call.1} parent=43 // pred_fallthru
          _
        // Predicated region
        $region49: #{tpu_custom_call.1} parent=43 // pred_check
          %p337 = pneg %p71
        $region50: #{tpu_custom_call.1} parent=43 // pred_check_branch
          %339 = sbr.rel (%p337) target = $region52
        $region51: #{tpu_custom_call.1} parent=43 // pred_region
          %s340 = sand.u32 %s61, 1
          %s341 = scalar_lea.sflag [#allocation3], %s340
          %s342 = sand.u32 %s61, 1
          %s343 = smul.addr %s342, 16
          %s344 = scalar_lea.vmem [#allocation2], %s343
          %s345 = smul.u32 2, %s25
          %347 = vsyncadd %s341, 0
          %s348 = smul.addr %s345, 2
          %s349 = smul.addr %s348, 4
          %s350 = scalar_lea.hbm %s1, %s349
          %s351 = sshll.u32 %s350, 4
          %s352 = int_to_ptr.hbm [resolvable:$true] %s351
          %s353 = sshll.u32 %s344, 4
          %s354 = int_to_ptr.vmem [resolvable:$true] %s353
          %359 = dma.hbm_to_vmem [thread:$0]  %s352, 256, %s354, %s341, 128, 128, 8
        $region52: #{tpu_custom_call.1} parent=43 // pred_fallthru
          _
        // Predicated region
        $region53: #{tpu_custom_call.1} parent=43 // pred_check
          %p360 = pneg %p97
        $region54: #{tpu_custom_call.1} parent=43 // pred_check_branch
          %362 = sbr.rel (%p360) target = $region56
        $region55: #{tpu_custom_call.1} parent=43 // pred_region
          %s363 = sand.u32 %s25, 1
          %s364 = scalar_lea.sflag [#allocation6], %s363
          %s365 = sand.u32 %s87, 1
          %s366 = smul.addr %s365, 16
          %s367 = scalar_lea.vmem [#allocation5], %s366
          %s368 = smul.u32 2, %s25
          %370 = vsyncadd %s364, 0
          %s371 = smul.addr %s368, 2
          %s372 = smul.addr %s371, 4
          %s373 = scalar_lea.hbm %s2, %s372
          %s374 = sshll.u32 %s373, 4
          %s375 = int_to_ptr.hbm [resolvable:$true] %s374
          %s376 = sshll.u32 %s367, 4
          %s377 = int_to_ptr.vmem [resolvable:$true] %s376
          %382 = dma.hbm_to_vmem [thread:$0]  %s375, 256, %s377, %s364, 128, 128, 8
        $region56: #{tpu_custom_call.1} parent=43 // pred_fallthru
          _
      $region44: #{tpu_custom_call.1} parent=5 // pred_fallthru
        _
      %p383 = scmp.le.s32.totalorder 1, %s25
      %p384 = scmp.lt.s32.totalorder %s25, 3
      %p385 = pnand %p383, %p384
      %p386 = pneg %p385
      // Predicated region
      $region57: #{tpu_custom_call.1} parent=5 // pred_check
        _
      $region58: #{tpu_custom_call.1} parent=5 // pred_check_branch
        %388 = sbr.rel (%p385) target = $region60
      $region59: #{tpu_custom_call.1} parent=5 // pred_region
        %s389 = ssub.s32 %s25, 1
        %s390 = sand.u32 %s64, 1
        %s391 = scalar_lea.sflag [#allocation3], %s390
        %s392 = sand.u32 %s64, 1
        %s393 = smul.addr %s392, 16
        %s394 = scalar_lea.vmem [#allocation2], %s393
        // Predicated region
        $region61: #{tpu_custom_call.1} parent=59 // pred_check
          %p395 = pneg %p77
        $region62: #{tpu_custom_call.1} parent=59 // pred_check_branch
          %397 = sbr.rel (%p395) target = $region64
        $region63: #{tpu_custom_call.1} parent=59 // pred_region
          %399 = dma.done %s391, 256
        $region64: #{tpu_custom_call.1} parent=59 // pred_fallthru
          _
        %s400 = sand.u32 %s30, 1
        %s401 = scalar_lea.sflag [#allocation6], %s400
        %s402 = sand.u32 %s90, 1
        %s403 = smul.addr %s402, 16
        %s404 = scalar_lea.vmem [#allocation5], %s403
        // Predicated region
        $region65: #{tpu_custom_call.1} parent=59 // pred_check
          %p405 = pneg %p103
        $region66: #{tpu_custom_call.1} parent=59 // pred_check_branch
          %407 = sbr.rel (%p405) target = $region68
        $region67: #{tpu_custom_call.1} parent=59 // pred_region
          %409 = dma.done %s401, 256
        $region68: #{tpu_custom_call.1} parent=59 // pred_fallthru
          _
        // Predicated region
        $region69: #{tpu_custom_call.1} parent=59 // pred_check
          %p410 = pneg %p250
        $region70: #{tpu_custom_call.1} parent=59 // pred_check_branch
          %412 = sbr.rel (%p410) target = $region72
        $region71: #{tpu_custom_call.1} parent=59 // pred_region
          %414 = dma.done [#allocation6], 512
        $region72: #{tpu_custom_call.1} parent=59 // pred_fallthru
          _
        %s415 = smul.u32 2, %s30
        %p416 = scmp.lt.s32.totalorder %s415, 3
        %s417 = scalar_select %p416, %s415, 3
        %s418 = smul.addr %s417, 2
        %s419 = smul.addr %s418, 4
        %s420 = scalar_lea.vmem %s0, %s419
        %p421 = pneg %p51
        %p422 = pneg %p48
        %s423 = sand.u32 %s64, 1
        %s424 = scalar_lea.sflag [#allocation3], %s423
        %s425 = sand.u32 %s64, 1
        %s426 = smul.addr %s425, 16
        %s427 = scalar_lea.vmem [#allocation2], %s426
        %p428 = pneg %p77
        %p429 = pneg %p74
        %s430 = sand.u32 %s30, 1
        %s431 = scalar_lea.sflag [#allocation6], %s430
        %s432 = sand.u32 %s90, 1
        %s433 = smul.addr %s432, 16
        %s434 = scalar_lea.vmem [#allocation5], %s433
        %p435 = pneg %p103
        %p436 = pneg %p100
        %p437 = pneg %p124
        %p438 = pneg %p121
        %p439 = pneg %p145
        %p440 = pneg %p142
        %p441 = pneg %p166
        %p442 = pneg %p163
        %p443 = pneg %p187
        %p444 = pneg %p184
        %p445 = pneg %p208
        %p446 = pneg %p205
        %p447 = pneg %p229
        %p448 = pneg %p226
        %p449 = pneg %p250
        %p450 = pneg %p247
        %p451 = pneg %p276
        %p452 = pneg %p273
        %s453 = sand.u32 %s263, 1
        %s454 = scalar_lea.sflag [#allocation4], %s453
        %s455 = sand.u32 %s263, 1
        %s456 = smul.addr %s455, 32
        %s457 = scalar_lea.vmem [#allocation8], %s456
        %s458 = smul.u32 2, %s30
        %p459 = scmp.lt.s32.totalorder %s458, 3
        %s460 = scalar_select %p459, %s458, 3
        %s461 = smul.addr %s460, 2
        %s462 = smul.addr %s461, 4
        %s463 = scalar_lea.vmem %s0, %s462
        %s464 = smul.u32 2, %s30
        %s465 = smul.u32 2, %s30
        %s466 = smul.u32 2, %s30
        %s467 = smul.u32 2, %s30
        %v468 = vld [vmem:[%s3] sm:$0xff]
        %v469 = vld [vmem:[%s4] sm:$0xff]
        %v470 = vld [vmem:[%s5] sm:$0xff]
        %v471 = vld [vmem:[%s6] sm:$0xff]
        %v472 = vld [vmem:[%s7] sm:$0xff]
        %v473 = vld [vmem:[%s8] sm:$0xff]
        %v474 = vld [vmem:[#allocation7] ss:$8 sm:$0x3]
        %s475 = scalar_lea.vmem [#allocation7], 1
        %v476 = vld [vmem:[%s475] ss:$8 sm:$0x3]
        %s477 = scalar_lea.vmem [#allocation7], 2
        %v478 = vld [vmem:[%s477] ss:$8 sm:$0x3]
        %s479 = scalar_lea.vmem [#allocation7], 3
        %v480 = vld [vmem:[%s479] ss:$8 sm:$0x3]
        %s481 = scalar_lea.vmem [#allocation7], 5
        %v482 = vld [vmem:[%s481] ss:$8 sm:$0x3]
        %s483 = scalar_lea.vmem [#allocation7], 6
        %v484 = vld [vmem:[%s483] ss:$8 sm:$0x3]
        %s485 = scalar_lea.vmem [#allocation7], 7
        %v486 = vld [vmem:[%s485] ss:$8 sm:$0x3]
        %s487 = scalar_lea.vmem [#allocation7], 16
        %v488 = vld [vmem:[%s487] ss:$8 sm:$0x3]
        %v489 = vld [vmem:[%s463] sm:$0xff]
        %v490 = vld [vmem:[%s394] sm:$0xff]
        %492 = vst [vmem:[#allocation1] ss:$2 sm:$0xff] %v490
        %v493 = vld.sshfl [vmem:[#allocation1] sm:$0xff pattern:$0x75316420]
        %v494 = vld.sshfl [vmem:[#allocation1 + $0x8] sm:$0xff pattern:$0x75316420]
        %vm495 = vcmask 31744
        %v497 = vsel %vm495, %v469, 0
        %vm499 = vcmask 1043456
        %v500 = vsel %vm499, %v493, 0
        %v502 = vsel %vm499, %v494, 0
        %504 = vmatpush.msra.mxu0 0.0
        %505 = vmatpush.msra.mxu0 0.0
        %506 = vmatpush.msra.mxu0 0.0
        %507 = vmatpush.msra.mxu0 0.0
        %508 = vmatpush.msra.mxu0 0.0
        %509 = vmatpush.msra.mxu0 0.0
        %510 = vmatpush.msra.mxu0 0.0
        %511 = vmatpush.msra.mxu0 0.0
        %512 = vmatpush.msra.mxu0 0.0
        %513 = vmatpush.msra.mxu0 0.0
        %514 = vmatpush.msra.mxu0 0.0
        %515 = vmatpush.msra.mxu0 0.0
        %516 = vmatpush.msra.mxu0 0.0
        %517 = vmatpush.msra.mxu0 0.0
        %518 = vmatpush.msra.mxu0 0.0
        %519 = vmatpush.msra.mxu0 %v500
        %520 = vmatmul.f32.gmra.mxu0 %v497
        %v521 = vpop.f32.mrf.mxu0
        %v522 = vadd.f32 0.0, %v521
        %523 = vdwg.mxu0
        %524 = vmatpush.msra.mxu0 0.0
        %525 = vmatpush.msra.mxu0 0.0
        %526 = vmatpush.msra.mxu0 0.0
        %527 = vmatpush.msra.mxu0 0.0
        %528 = vmatpush.msra.mxu0 0.0
        %529 = vmatpush.msra.mxu0 0.0
        %530 = vmatpush.msra.mxu0 0.0
        %531 = vmatpush.msra.mxu0 0.0
        %532 = vmatpush.msra.mxu0 0.0
        %533 = vmatpush.msra.mxu0 0.0
        %534 = vmatpush.msra.mxu0 0.0
        %535 = vmatpush.msra.mxu0 0.0
        %536 = vmatpush.msra.mxu0 0.0
        %537 = vmatpush.msra.mxu0 0.0
        %538 = vmatpush.msra.mxu0 0.0
        %539 = vmatpush.msra.mxu0 %v502
        %540 = vmatmul.f32.gmra.mxu0 %v497
        %v541 = vpop.f32.mrf.mxu0
        %v542 = vadd.f32 0.0, %v541
        %543 = vdwg.mxu0
        %545 = vst [vmem:[#allocation1] ss:$2 sm:$0xff] %v489
        %v546 = vld.sshfl [vmem:[#allocation1] sm:$0xff pattern:$0x75316420]
        %v547 = vld.sshfl [vmem:[#allocation1 + $0x8] sm:$0xff pattern:$0x75316420]
        %v549 = vsel %vm495, %v468, 0
        %v551 = vsel %vm499, %v546, 0
        %v553 = vsel %vm499, %v547, 0
        %555 = vmatpush.msra.mxu0 0.0
        %556 = vmatpush.msra.mxu0 0.0
        %557 = vmatpush.msra.mxu0 0.0
        %558 = vmatpush.msra.mxu0 0.0
        %559 = vmatpush.msra.mxu0 0.0
        %560 = vmatpush.msra.mxu0 0.0
        %561 = vmatpush.msra.mxu0 0.0
        %562 = vmatpush.msra.mxu0 0.0
        %563 = vmatpush.msra.mxu0 0.0
        %564 = vmatpush.msra.mxu0 0.0
        %565 = vmatpush.msra.mxu0 0.0
        %566 = vmatpush.msra.mxu0 0.0
        %567 = vmatpush.msra.mxu0 0.0
        %568 = vmatpush.msra.mxu0 0.0
        %569 = vmatpush.msra.mxu0 0.0
        %570 = vmatpush.msra.mxu0 %v551
        %571 = vmatmul.f32.gmra.mxu0 %v549
        %v572 = vpop.f32.mrf.mxu0
        %v573 = vadd.f32 %v522, %v572
        %574 = vdwg.mxu0
        %575 = vmatpush.msra.mxu0 0.0
        %576 = vmatpush.msra.mxu0 0.0
        %577 = vmatpush.msra.mxu0 0.0
        %578 = vmatpush.msra.mxu0 0.0
        %579 = vmatpush.msra.mxu0 0.0
        %580 = vmatpush.msra.mxu0 0.0
        %581 = vmatpush.msra.mxu0 0.0
        %582 = vmatpush.msra.mxu0 0.0
        %583 = vmatpush.msra.mxu0 0.0
        %584 = vmatpush.msra.mxu0 0.0
        %585 = vmatpush.msra.mxu0 0.0
        %586 = vmatpush.msra.mxu0 0.0
        %587 = vmatpush.msra.mxu0 0.0
        %588 = vmatpush.msra.mxu0 0.0
        %589 = vmatpush.msra.mxu0 0.0
        %590 = vmatpush.msra.mxu0 %v553
        %591 = vmatmul.f32.gmra.mxu0 %v549
        %v592 = vpop.f32.mrf.mxu0
        %v593 = vadd.f32 %v542, %v592
        %594 = vdwg.mxu0
        %v595 = vld [vmem:[%s404] sm:$0xff]
        %597 = vst [vmem:[#allocation1] ss:$2 sm:$0xff] %v595
        %v598 = vld.sshfl [vmem:[#allocation1] sm:$0xff pattern:$0x75316420]
        %v599 = vld.sshfl [vmem:[#allocation1 + $0x8] sm:$0xff pattern:$0x75316420]
        %v601 = vsel %vm495, %v470, 0
        %v603 = vsel %vm499, %v598, 0
        %v605 = vsel %vm499, %v599, 0
        %607 = vmatpush.msra.mxu0 0.0
        %608 = vmatpush.msra.mxu0 0.0
        %609 = vmatpush.msra.mxu0 0.0
        %610 = vmatpush.msra.mxu0 0.0
        %611 = vmatpush.msra.mxu0 0.0
        %612 = vmatpush.msra.mxu0 0.0
        %613 = vmatpush.msra.mxu0 0.0
        %614 = vmatpush.msra.mxu0 0.0
        %615 = vmatpush.msra.mxu0 0.0
        %616 = vmatpush.msra.mxu0 0.0
        %617 = vmatpush.msra.mxu0 0.0
        %618 = vmatpush.msra.mxu0 0.0
        %619 = vmatpush.msra.mxu0 0.0
        %620 = vmatpush.msra.mxu0 0.0
        %621 = vmatpush.msra.mxu0 0.0
        %622 = vmatpush.msra.mxu0 %v603
        %623 = vmatmul.f32.gmra.mxu0 %v601
        %v624 = vpop.f32.mrf.mxu0
        %v625 = vadd.f32 0.0, %v624
        %626 = vdwg.mxu0
        %627 = vmatpush.msra.mxu0 0.0
        %628 = vmatpush.msra.mxu0 0.0
        %629 = vmatpush.msra.mxu0 0.0
        %630 = vmatpush.msra.mxu0 0.0
        %631 = vmatpush.msra.mxu0 0.0
        %632 = vmatpush.msra.mxu0 0.0
        %633 = vmatpush.msra.mxu0 0.0
        %634 = vmatpush.msra.mxu0 0.0
        %635 = vmatpush.msra.mxu0 0.0
        %636 = vmatpush.msra.mxu0 0.0
        %637 = vmatpush.msra.mxu0 0.0
        %638 = vmatpush.msra.mxu0 0.0
        %639 = vmatpush.msra.mxu0 0.0
        %640 = vmatpush.msra.mxu0 0.0
        %641 = vmatpush.msra.mxu0 0.0
        %642 = vmatpush.msra.mxu0 %v605
        %643 = vmatmul.f32.gmra.mxu0 %v601
        %v644 = vpop.f32.mrf.mxu0
        %v645 = vadd.f32 0.0, %v644
        %646 = vdwg.mxu0
        %v647 = vadd.f32 %v573, %v625
        %v648 = vadd.f32 %v593, %v645
        %650 = vset.pattern.permute.xlu0 0
        %651 = vperm.xlu0 %650, %v471
        %v652 = vpop.permute.xlu0 %651
        %v654 = vadd.f32 %v647, %v652
        %v655 = vadd.f32 %v648, %v652
        %v656 = vmax.f32 %v654, 0.0
        %v657 = vmax.f32 %v655, 0.0
        %658 = vrot.lane.b32.xlu0 %v656, 17
        %v659 = vpop.permute.xlu0 %658
        %660 = vrot.lane.b32.xlu0 %v657, 17
        %v661 = vpop.permute.xlu0 %660
        %v662 = vlaneseq
        %v663 = vand.u32 %v662, 127
        %vm664 = vcmp.lt.s32.totalorder %v663, 17
        %v665 = vsel %vm664, %v659, %v661
        %v666 = vsel %vm664, %v661, %v659
        %v668 = vperm.slane %v474, 0
        %v669 = vperm.slane %v474, 1
        %v672 = vmul.f32 %v666, %v668
        %v673 = vmul.f32 %v665, %v669
        %674 = vrot.lane.b32.xlu0 %v656, 16
        %v675 = vpop.permute.xlu0 %674
        %676 = vrot.lane.b32.xlu0 %v657, 16
        %v677 = vpop.permute.xlu0 %676
        %vm678 = vcmp.lt.s32.totalorder %v663, 16
        %v679 = vsel %vm678, %v675, %v677
        %v680 = vsel %vm678, %v677, %v675
        %v682 = vperm.slane %v476, 0
        %v683 = vperm.slane %v476, 1
        %v686 = vmul.f32 %v680, %v682
        %v687 = vmul.f32 %v679, %v683
        %688 = vrot.lane.b32.xlu0 %v656, 15
        %v689 = vpop.permute.xlu0 %688
        %690 = vrot.lane.b32.xlu0 %v657, 15
        %v691 = vpop.permute.xlu0 %690
        %vm692 = vcmp.lt.s32.totalorder %v663, 15
        %v693 = vsel %vm692, %v689, %v691
        %v694 = vsel %vm692, %v691, %v689
        %v696 = vperm.slane %v478, 0
        %v697 = vperm.slane %v478, 1
        %v700 = vmul.f32 %v694, %v696
        %v701 = vmul.f32 %v693, %v697
        %702 = vrot.lane.b32.xlu0 %v656, 1
        %v703 = vpop.permute.xlu0 %702
        %704 = vrot.lane.b32.xlu0 %v657, 1
        %v705 = vpop.permute.xlu0 %704
        %vm706 = vcmp.lt.s32.totalorder %v663, 1
        %v707 = vsel %vm706, %v703, %v705
        %v708 = vsel %vm706, %v705, %v703
        %v710 = vperm.slane %v480, 0
        %v711 = vperm.slane %v480, 1
        %v714 = vmul.f32 %v708, %v710
        %v715 = vmul.f32 %v707, %v711
        %716 = vrot.lane.b32.xlu0 %v656, 127
        %v717 = vpop.permute.xlu0 %716
        %718 = vrot.lane.b32.xlu0 %v657, 127
        %v719 = vpop.permute.xlu0 %718
        %vm720 = vcmp.lt.s32.totalorder %v663, 127
        %v721 = vsel %vm720, %v717, %v719
        %v722 = vsel %vm720, %v719, %v717
        %v724 = vperm.slane %v482, 0
        %v725 = vperm.slane %v482, 1
        %v728 = vmul.f32 %v721, %v724
        %v729 = vmul.f32 %v722, %v725
        %730 = vrot.lane.b32.xlu0 %v656, 113
        %v731 = vpop.permute.xlu0 %730
        %732 = vrot.lane.b32.xlu0 %v657, 113
        %v733 = vpop.permute.xlu0 %732
        %vm734 = vcmp.lt.s32.totalorder %v663, 113
        %v735 = vsel %vm734, %v731, %v733
        %v736 = vsel %vm734, %v733, %v731
        %v738 = vperm.slane %v484, 0
        %v739 = vperm.slane %v484, 1
        %v742 = vmul.f32 %v735, %v738
        %v743 = vmul.f32 %v736, %v739
        %744 = vrot.lane.b32.xlu0 %v656, 112
        %v745 = vpop.permute.xlu0 %744
        %746 = vrot.lane.b32.xlu0 %v657, 112
        %v747 = vpop.permute.xlu0 %746
        %vm748 = vcmp.lt.s32.totalorder %v663, 112
        %v749 = vsel %vm748, %v745, %v747
        %v750 = vsel %vm748, %v747, %v745
        %v752 = vperm.slane %v486, 0
        %v753 = vperm.slane %v486, 1
        %v756 = vmul.f32 %v749, %v752
        %v757 = vmul.f32 %v750, %v753
        %758 = vrot.lane.b32.xlu0 %v656, 111
        %v759 = vpop.permute.xlu0 %758
        %760 = vrot.lane.b32.xlu0 %v657, 111
        %v761 = vpop.permute.xlu0 %760
        %vm762 = vcmp.lt.s32.totalorder %v663, 111
        %v763 = vsel %vm762, %v759, %v761
        %v764 = vsel %vm762, %v761, %v759
        %v766 = vperm.slane %v488, 0
        %v767 = vperm.slane %v488, 1
        %v770 = vmul.f32 %v763, %v766
        %v771 = vmul.f32 %v764, %v767
        %773 = vset.pattern.permute.xlu0 0
        %774 = vperm.xlu0 %773, %v473
        %v775 = vpop.permute.xlu0 %774
        %vm777 = vcmask 588800
        %v779 = vsel %vm777, %v472, 0
        %781 = vmatpush.msra.mxu0 0.0
        %782 = vmatpush.msra.mxu0 0.0
        %783 = vmatpush.msra.mxu0 0.0
        %784 = vmatpush.msra.mxu0 0.0
        %785 = vmatpush.msra.mxu0 0.0
        %786 = vmatpush.msra.mxu0 0.0
        %787 = vmatpush.msra.mxu0 0.0
        %788 = vmatpush.msra.mxu0 %v770
        %789 = vmatpush.msra.mxu0 %v756
        %790 = vmatpush.msra.mxu0 %v742
        %791 = vmatpush.msra.mxu0 %v728
        %792 = vmatpush.msra.mxu0 %v656
        %793 = vmatpush.msra.mxu0 %v714
        %794 = vmatpush.msra.mxu0 %v700
        %795 = vmatpush.msra.mxu0 %v686
        %796 = vmatpush.msra.mxu0 %v672
        %797 = vmatmul.f32.gmra.mxu0 %v779
        %v798 = vpop.f32.mrf.mxu0
        %v799 = vadd.f32 %v775, %v798
        %800 = vdwg.mxu0
        %801 = vmatpush.msra.mxu0 0.0
        %802 = vmatpush.msra.mxu0 0.0
        %803 = vmatpush.msra.mxu0 0.0
        %804 = vmatpush.msra.mxu0 0.0
        %805 = vmatpush.msra.mxu0 0.0
        %806 = vmatpush.msra.mxu0 0.0
        %807 = vmatpush.msra.mxu0 0.0
        %808 = vmatpush.msra.mxu0 %v771
        %809 = vmatpush.msra.mxu0 %v757
        %810 = vmatpush.msra.mxu0 %v743
        %811 = vmatpush.msra.mxu0 %v729
        %812 = vmatpush.msra.mxu0 %v657
        %813 = vmatpush.msra.mxu0 %v715
        %814 = vmatpush.msra.mxu0 %v701
        %815 = vmatpush.msra.mxu0 %v687
        %816 = vmatpush.msra.mxu0 %v673
        %817 = vmatmul.f32.gmra.mxu0 %v779
        %v818 = vpop.f32.mrf.mxu0
        %v819 = vadd.f32 %v775, %v818
        %820 = vdwg.mxu0
        %821 = vst [vmem:[%s457] sm:$0xff] %v799
        %822 = vst [vmem:[%s457 + $0x8] sm:$0xff] %v819
        %s823 = scalar_lea.vmem %s463, 8
        %v824 = vld [vmem:[%s823] sm:$0xff]
        %s825 = scalar_lea.vmem %s394, 8 [#allocation2]
        %v826 = vld [vmem:[%s825] sm:$0xff]
        %828 = vst [vmem:[#allocation1] ss:$2 sm:$0xff] %v826
        %v829 = vld.sshfl [vmem:[#allocation1] sm:$0xff pattern:$0x75316420]
        %v830 = vld.sshfl [vmem:[#allocation1 + $0x8] sm:$0xff pattern:$0x75316420]
        %v831 = vsel %vm499, %v829, 0
        %v833 = vsel %vm499, %v830, 0
        %835 = vmatpush.msra.mxu0 0.0
        %836 = vmatpush.msra.mxu0 0.0
        %837 = vmatpush.msra.mxu0 0.0
        %838 = vmatpush.msra.mxu0 0.0
        %839 = vmatpush.msra.mxu0 0.0
        %840 = vmatpush.msra.mxu0 0.0
        %841 = vmatpush.msra.mxu0 0.0
        %842 = vmatpush.msra.mxu0 0.0
        %843 = vmatpush.msra.mxu0 0.0
        %844 = vmatpush.msra.mxu0 0.0
        %845 = vmatpush.msra.mxu0 0.0
        %846 = vmatpush.msra.mxu0 0.0
        %847 = vmatpush.msra.mxu0 0.0
        %848 = vmatpush.msra.mxu0 0.0
        %849 = vmatpush.msra.mxu0 0.0
        %850 = vmatpush.msra.mxu0 %v831
        %851 = vmatmul.f32.gmra.mxu0 %v497
        %v852 = vpop.f32.mrf.mxu0
        %v853 = vadd.f32 0.0, %v852
        %854 = vdwg.mxu0
        %855 = vmatpush.msra.mxu0 0.0
        %856 = vmatpush.msra.mxu0 0.0
        %857 = vmatpush.msra.mxu0 0.0
        %858 = vmatpush.msra.mxu0 0.0
        %859 = vmatpush.msra.mxu0 0.0
        %860 = vmatpush.msra.mxu0 0.0
        %861 = vmatpush.msra.mxu0 0.0
        %862 = vmatpush.msra.mxu0 0.0
        %863 = vmatpush.msra.mxu0 0.0
        %864 = vmatpush.msra.mxu0 0.0
        %865 = vmatpush.msra.mxu0 0.0
        %866 = vmatpush.msra.mxu0 0.0
        %867 = vmatpush.msra.mxu0 0.0
        %868 = vmatpush.msra.mxu0 0.0
        %869 = vmatpush.msra.mxu0 0.0
        %870 = vmatpush.msra.mxu0 %v833
        %871 = vmatmul.f32.gmra.mxu0 %v497
        %v872 = vpop.f32.mrf.mxu0
        %v873 = vadd.f32 0.0, %v872
        %874 = vdwg.mxu0
        %876 = vst [vmem:[#allocation1] ss:$2 sm:$0xff] %v824
        %v877 = vld.sshfl [vmem:[#allocation1] sm:$0xff pattern:$0x75316420]
        %v878 = vld.sshfl [vmem:[#allocation1 + $0x8] sm:$0xff pattern:$0x75316420]
        %v879 = vsel %vm499, %v877, 0
        %v881 = vsel %vm499, %v878, 0
        %883 = vmatpush.msra.mxu0 0.0
        %884 = vmatpush.msra.mxu0 0.0
        %885 = vmatpush.msra.mxu0 0.0
        %886 = vmatpush.msra.mxu0 0.0
        %887 = vmatpush.msra.mxu0 0.0
        %888 = vmatpush.msra.mxu0 0.0
        %889 = vmatpush.msra.mxu0 0.0
        %890 = vmatpush.msra.mxu0 0.0
        %891 = vmatpush.msra.mxu0 0.0
        %892 = vmatpush.msra.mxu0 0.0
        %893 = vmatpush.msra.mxu0 0.0
        %894 = vmatpush.msra.mxu0 0.0
        %895 = vmatpush.msra.mxu0 0.0
        %896 = vmatpush.msra.mxu0 0.0
        %897 = vmatpush.msra.mxu0 0.0
        %898 = vmatpush.msra.mxu0 %v879
        %899 = vmatmul.f32.gmra.mxu0 %v549
        %v900 = vpop.f32.mrf.mxu0
        %v901 = vadd.f32 %v853, %v900
        %902 = vdwg.mxu0
        %903 = vmatpush.msra.mxu0 0.0
        %904 = vmatpush.msra.mxu0 0.0
        %905 = vmatpush.msra.mxu0 0.0
        %906 = vmatpush.msra.mxu0 0.0
        %907 = vmatpush.msra.mxu0 0.0
        %908 = vmatpush.msra.mxu0 0.0
        %909 = vmatpush.msra.mxu0 0.0
        %910 = vmatpush.msra.mxu0 0.0
        %911 = vmatpush.msra.mxu0 0.0
        %912 = vmatpush.msra.mxu0 0.0
        %913 = vmatpush.msra.mxu0 0.0
        %914 = vmatpush.msra.mxu0 0.0
        %915 = vmatpush.msra.mxu0 0.0
        %916 = vmatpush.msra.mxu0 0.0
        %917 = vmatpush.msra.mxu0 0.0
        %918 = vmatpush.msra.mxu0 %v881
        %919 = vmatmul.f32.gmra.mxu0 %v549
        %v920 = vpop.f32.mrf.mxu0
        %v921 = vadd.f32 %v873, %v920
        %922 = vdwg.mxu0
        %s923 = scalar_lea.vmem %s404, 8 [#allocation5]
        %v924 = vld [vmem:[%s923] sm:$0xff]
        %926 = vst [vmem:[#allocation1] ss:$2 sm:$0xff] %v924
        %v927 = vld.sshfl [vmem:[#allocation1] sm:$0xff pattern:$0x75316420]
        %v928 = vld.sshfl [vmem:[#allocation1 + $0x8] sm:$0xff pattern:$0x75316420]
        %v929 = vsel %vm499, %v927, 0
        %v931 = vsel %vm499, %v928, 0
        %933 = vmatpush.msra.mxu0 0.0
        %934 = vmatpush.msra.mxu0 0.0
        %935 = vmatpush.msra.mxu0 0.0
        %936 = vmatpush.msra.mxu0 0.0
        %937 = vmatpush.msra.mxu0 0.0
        %938 = vmatpush.msra.mxu0 0.0
        %939 = vmatpush.msra.mxu0 0.0
        %940 = vmatpush.msra.mxu0 0.0
        %941 = vmatpush.msra.mxu0 0.0
        %942 = vmatpush.msra.mxu0 0.0
        %943 = vmatpush.msra.mxu0 0.0
        %944 = vmatpush.msra.mxu0 0.0
        %945 = vmatpush.msra.mxu0 0.0
        %946 = vmatpush.msra.mxu0 0.0
        %947 = vmatpush.msra.mxu0 0.0
        %948 = vmatpush.msra.mxu0 %v929
        %949 = vmatmul.f32.gmra.mxu0 %v601
        %v950 = vpop.f32.mrf.mxu0
        %v951 = vadd.f32 0.0, %v950
        %952 = vdwg.mxu0
        %953 = vmatpush.msra.mxu0 0.0
        %954 = vmatpush.msra.mxu0 0.0
        %955 = vmatpush.msra.mxu0 0.0
        %956 = vmatpush.msra.mxu0 0.0
        %957 = vmatpush.msra.mxu0 0.0
        %958 = vmatpush.msra.mxu0 0.0
        %959 = vmatpush.msra.mxu0 0.0
        %960 = vmatpush.msra.mxu0 0.0
        %961 = vmatpush.msra.mxu0 0.0
        %962 = vmatpush.msra.mxu0 0.0
        %963 = vmatpush.msra.mxu0 0.0
        %964 = vmatpush.msra.mxu0 0.0
        %965 = vmatpush.msra.mxu0 0.0
        %966 = vmatpush.msra.mxu0 0.0
        %967 = vmatpush.msra.mxu0 0.0
        %968 = vmatpush.msra.mxu0 %v931
        %969 = vmatmul.f32.gmra.mxu0 %v601
        %v970 = vpop.f32.mrf.mxu0
        %v971 = vadd.f32 0.0, %v970
        %972 = vdwg.mxu0
        %v973 = vadd.f32 %v901, %v951
        %v974 = vadd.f32 %v921, %v971
        %v975 = vadd.f32 %v973, %v652
        %v976 = vadd.f32 %v974, %v652
        %v977 = vmax.f32 %v975, 0.0
        %v978 = vmax.f32 %v976, 0.0
        %979 = vrot.lane.b32.xlu0 %v977, 17
        %v980 = vpop.permute.xlu0 %979
        %981 = vrot.lane.b32.xlu0 %v978, 17
        %v982 = vpop.permute.xlu0 %981
        %v983 = vsel %vm664, %v980, %v982
        %v984 = vsel %vm664, %v982, %v980
        %v985 = vmul.f32 %v984, %v668
        %v986 = vmul.f32 %v983, %v669
        %987 = vrot.lane.b32.xlu0 %v977, 16
        %v988 = vpop.permute.xlu0 %987
        %989 = vrot.lane.b32.xlu0 %v978, 16
        %v990 = vpop.permute.xlu0 %989
        %v991 = vsel %vm678, %v988, %v990
        %v992 = vsel %vm678, %v990, %v988
        %v993 = vmul.f32 %v992, %v682
        %v994 = vmul.f32 %v991, %v683
        %995 = vrot.lane.b32.xlu0 %v977, 15
        %v996 = vpop.permute.xlu0 %995
        %997 = vrot.lane.b32.xlu0 %v978, 15
        %v998 = vpop.permute.xlu0 %997
        %v999 = vsel %vm692, %v996, %v998
        %v1000 = vsel %vm692, %v998, %v996
        %v1001 = vmul.f32 %v1000, %v696
        %v1002 = vmul.f32 %v999, %v697
        %1003 = vrot.lane.b32.xlu0 %v977, 1
        %v1004 = vpop.permute.xlu0 %1003
        %1005 = vrot.lane.b32.xlu0 %v978, 1
        %v1006 = vpop.permute.xlu0 %1005
        %v1007 = vsel %vm706, %v1004, %v1006
        %v1008 = vsel %vm706, %v1006, %v1004
        %v1009 = vmul.f32 %v1008, %v710
        %v1010 = vmul.f32 %v1007, %v711
        %1011 = vrot.lane.b32.xlu0 %v977, 127
        %v1012 = vpop.permute.xlu0 %1011
        %1013 = vrot.lane.b32.xlu0 %v978, 127
        %v1014 = vpop.permute.xlu0 %1013
        %v1015 = vsel %vm720, %v1012, %v1014
        %v1016 = vsel %vm720, %v1014, %v1012
        %v1017 = vmul.f32 %v1015, %v724
        %v1018 = vmul.f32 %v1016, %v725
        %1019 = vrot.lane.b32.xlu0 %v977, 113
        %v1020 = vpop.permute.xlu0 %1019
        %1021 = vrot.lane.b32.xlu0 %v978, 113
        %v1022 = vpop.permute.xlu0 %1021
        %v1023 = vsel %vm734, %v1020, %v1022
        %v1024 = vsel %vm734, %v1022, %v1020
        %v1025 = vmul.f32 %v1023, %v738
        %v1026 = vmul.f32 %v1024, %v739
        %1027 = vrot.lane.b32.xlu0 %v977, 112
        %v1028 = vpop.permute.xlu0 %1027
        %1029 = vrot.lane.b32.xlu0 %v978, 112
        %v1030 = vpop.permute.xlu0 %1029
        %v1031 = vsel %vm748, %v1028, %v1030
        %v1032 = vsel %vm748, %v1030, %v1028
        %v1033 = vmul.f32 %v1031, %v752
        %v1034 = vmul.f32 %v1032, %v753
        %1035 = vrot.lane.b32.xlu0 %v977, 111
        %v1036 = vpop.permute.xlu0 %1035
        %1037 = vrot.lane.b32.xlu0 %v978, 111
        %v1038 = vpop.permute.xlu0 %1037
        %v1039 = vsel %vm762, %v1036, %v1038
        %v1040 = vsel %vm762, %v1038, %v1036
        %v1041 = vmul.f32 %v1039, %v766
        %v1042 = vmul.f32 %v1040, %v767
        %1043 = vmatpush.msra.mxu0 0.0
        %1044 = vmatpush.msra.mxu0 0.0
        %1045 = vmatpush.msra.mxu0 0.0
        %1046 = vmatpush.msra.mxu0 0.0
        %1047 = vmatpush.msra.mxu0 0.0
        %1048 = vmatpush.msra.mxu0 0.0
        %1049 = vmatpush.msra.mxu0 0.0
        %1050 = vmatpush.msra.mxu0 %v1041
        %1051 = vmatpush.msra.mxu0 %v1033
        %1052 = vmatpush.msra.mxu0 %v1025
        %1053 = vmatpush.msra.mxu0 %v1017
        %1054 = vmatpush.msra.mxu0 %v977
        %1055 = vmatpush.msra.mxu0 %v1009
        %1056 = vmatpush.msra.mxu0 %v1001
        %1057 = vmatpush.msra.mxu0 %v993
        %1058 = vmatpush.msra.mxu0 %v985
        %1059 = vmatmul.f32.gmra.mxu0 %v779
        %v1060 = vpop.f32.mrf.mxu0
        %v1061 = vadd.f32 %v775, %v1060
        %1062 = vdwg.mxu0
        %1063 = vmatpush.msra.mxu0 0.0
        %1064 = vmatpush.msra.mxu0 0.0
        %1065 = vmatpush.msra.mxu0 0.0
        %1066 = vmatpush.msra.mxu0 0.0
        %1067 = vmatpush.msra.mxu0 0.0
        %1068 = vmatpush.msra.mxu0 0.0
        %1069 = vmatpush.msra.mxu0 0.0
        %1070 = vmatpush.msra.mxu0 %v1042
        %1071 = vmatpush.msra.mxu0 %v1034
        %1072 = vmatpush.msra.mxu0 %v1026
        %1073 = vmatpush.msra.mxu0 %v1018
        %1074 = vmatpush.msra.mxu0 %v978
        %1075 = vmatpush.msra.mxu0 %v1010
        %1076 = vmatpush.msra.mxu0 %v1002
        %1077 = vmatpush.msra.mxu0 %v994
        %1078 = vmatpush.msra.mxu0 %v986
        %1079 = vmatmul.f32.gmra.mxu0 %v779
        %v1080 = vpop.f32.mrf.mxu0
        %v1081 = vadd.f32 %v775, %v1080
        %1082 = vdwg.mxu0
        %s1083 = scalar_lea.vmem %s457, 16 [#allocation8]
        %1084 = vst [vmem:[%s1083] sm:$0xff] %v1061
        %1085 = vst [vmem:[%s1083 + $0x8] sm:$0xff] %v1081
        %s1086 = sand.u32 %s263, 1
        %s1087 = scalar_lea.sflag [#allocation4], %s1086
        %s1088 = sand.u32 %s263, 1
        %s1089 = smul.addr %s1088, 32
        %s1090 = scalar_lea.vmem [#allocation8], %s1089
        // Predicated region
        $region73: #{tpu_custom_call.1} parent=59 // pred_check
          %p1091 = pneg %p273
        $region74: #{tpu_custom_call.1} parent=59 // pred_check_branch
          %1093 = sbr.rel (%p1091) target = $region76
        $region75: #{tpu_custom_call.1} parent=59 // pred_region
          %s1094 = smul.u32 2, %s30
          %1096 = vsyncadd %s1087, 0
          %s1097 = smul.addr %s1094, 2
          %s1098 = smul.addr %s1097, 8
          %s1099 = scalar_lea.hbm %s10, %s1098
          %s1100 = sshll.u32 %s1090, 4
          %s1101 = int_to_ptr.vmem [resolvable:$true] %s1100
          %s1102 = sshll.u32 %s1099, 4
          %s1103 = int_to_ptr.hbm [resolvable:$true] %s1102
          %1108 = dma.vmem_to_hbm [thread:$0]  %s1101, 512, %s1103, %s1087, 256, 256, 16
        $region76: #{tpu_custom_call.1} parent=59 // pred_fallthru
          _
      $region60: #{tpu_custom_call.1} parent=5 // pred_fallthru
        _
      %p1109 = scmp.le.s32.totalorder 2, %s25
      // Predicated region
      $region77: #{tpu_custom_call.1} parent=5 // pred_check
        %p1110 = pneg %p1109
      $region78: #{tpu_custom_call.1} parent=5 // pred_check_branch
        %1112 = sbr.rel (%p1110) target = $region80
      $region79: #{tpu_custom_call.1} parent=5 // pred_region
        %s1113 = ssub.s32 %s25, 2
        // Predicated region
        $region81: #{tpu_custom_call.1} parent=79 // pred_check
          %p1114 = pneg %p279
        $region82: #{tpu_custom_call.1} parent=79 // pred_check_branch
          %1116 = sbr.rel (%p1114) target = $region84
        $region83: #{tpu_custom_call.1} parent=79 // pred_region
          %s1117 = sand.u32 %s264, 1
          %s1118 = scalar_lea.sflag [#allocation4], %s1117
          %s1119 = sand.u32 %s264, 1
          %s1120 = smul.addr %s1119, 32
          %s1121 = scalar_lea.vmem [#allocation8], %s1120
          %1123 = dma.done %s1118, 512
        $region84: #{tpu_custom_call.1} parent=79 // pred_fallthru
          _
      $region80: #{tpu_custom_call.1} parent=5 // pred_fallthru
        _
    $region6: #{tpu_custom_call.1} parent=1 // loop_footer
      %s29 = sadd.s32 1, %s25
    $region7: #{tpu_custom_call.1} parent=1 // loop_footer_branch
      %24 = sbr.rel target = $region3
    $region8: #{tpu_custom_call.1} parent=1 // loop_exit
      _
    %1124 = vsyncpa [#allocation3], 1
    %s1125 = scalar_lea.sflag [#allocation3], 1
    %1126 = vsyncpa %s1125, 1
    %1127 = vsyncpa [#allocation6], 1
    %s1128 = scalar_lea.sflag [#allocation6], 1
    %1129 = vsyncpa %s1128, 1
    %1130 = vsyncpa [#allocation4], 1
    %s1131 = scalar_lea.sflag [#allocation4], 1
    %1132 = vsyncpa %s1131, 1

</llo_original>
